<compile_context>
chip_gen: v7x
topology: tpu7x:2x2x1
jax: 0.10.0
libtpu: 0.0.40
codegen_flags: <defaults>
</compile_context>

<pallas_src>
import functools

import jax
import jax.numpy as jnp
from jax.experimental import pallas as pl
from jax.experimental.pallas import tpu as pltpu


def _round_up(n: int, m: int) -> int:
    return ((n + m - 1) // m) * m


def _sage_model_kernel(
    x_ref,      # (S1p, Fp)   bf16  src features of MFG-0 (VMEM resident)
    a1_ref,     # (TM1, S1p)  bf16  row block of degree-normalized adjacency of MFG-0
    a2_ref,     # (D2p, D1p)  bf16  degree-normalized adjacency of MFG-1 (resident)
    w1c_ref,    # (2*Fp, Hp)  bf16  [W1_self ; W1_neigh] (resident)
    b1_ref,     # (1, Hp)     f32
    w2c_ref,    # (2*Hp, Cp)  bf16  [W2_self ; W2_neigh] (resident)
    b2_ref,     # (1, Cp)     f32
    out_ref,    # (D2p, Cp)   f32   log_softmax output (resident, written at last step)
    h1_ref,     # (D1p, Hp)   f32   scratch: layer-1 activations (persists across grid)
    z1_ref,     # (TM1, 2*Fp) bf16  scratch: fused layer-1 operand [h_dst | neigh]
    z2_ref,     # (D2p, 2*Hp) bf16  scratch: fused layer-2 operand
    *,
    tm1: int,
    num_classes: int,
):
    i = pl.program_id(0)
    row0 = pl.multiple_of(i * tm1, tm1)
    fp = x_ref.shape[1]
    hp = h1_ref.shape[1]

    # ---- layer 1 (SAGEConv mean) for dst-row block i --------------------
    neigh1 = jnp.dot(a1_ref[...], x_ref[...],
                     preferred_element_type=jnp.float32)          # (tm1, Fp) f32
    # fused self+neigh matmul operand: [h_dst | neigh]
    z1_ref[:, :fp] = x_ref[pl.ds(row0, tm1), :]                   # dst nodes lead x
    z1_ref[:, fp:] = neigh1.astype(jnp.bfloat16)
    h1 = jnp.dot(z1_ref[...], w1c_ref[...],
                 preferred_element_type=jnp.float32) + b1_ref[...]
    h1_ref[pl.ds(row0, tm1), :] = jnp.maximum(h1, 0.0)            # F.relu, f32

    # ---- layer 2 + log_softmax once all layer-1 blocks are done ---------
    @pl.when(i == pl.num_programs(0) - 1)
    def _():
        d2p = a2_ref.shape[0]
        h1_all = h1_ref[...].astype(jnp.bfloat16)                 # (D1p, Hp)
        neigh2 = jnp.dot(a2_ref[...], h1_all,
                         preferred_element_type=jnp.float32)      # (D2p, Hp) f32
        z2_ref[:, :hp] = h1_all[:d2p, :]                          # h[:num_dst_nodes]
        z2_ref[:, hp:] = neigh2.astype(jnp.bfloat16)
        h2 = jnp.dot(z2_ref[...], w2c_ref[...],
                     preferred_element_type=jnp.float32) + b2_ref[...]

        # mask padded class lanes so log_softmax only sees real classes
        col = jax.lax.broadcasted_iota(jnp.int32, h2.shape, 1)
        h2 = jnp.where(col < num_classes, h2, -1e30)

        m = jnp.max(h2, axis=-1, keepdims=True)
        s = h2 - m
        lse = jnp.log(jnp.sum(jnp.exp(s), axis=-1, keepdims=True))
        out_ref[...] = s - lse


def _prepare(x, a1, deg1, a2, deg2, params, tm1):
    """Host-side prep: fold degrees, pad to (sublane, lane) multiples, cast bf16."""
    w1s, w1n, b1, w2s, w2n, b2 = params
    s1, fin = x.shape
    d1 = a1.shape[0]
    d2 = a2.shape[0]
    h = w1s.shape[1]
    c = w2s.shape[1]
    # DGL MFG convention: dst nodes are the leading rows of the src block.
    assert d1 <= s1 and d2 <= d1

    tm1 = max(16, min(_round_up(tm1, 16), _round_up(d1, 16)))  # bf16 sublane granule
    d1p = _round_up(d1, tm1)
    d2p = _round_up(d2, 8)
    s1p = _round_up(max(s1, d1p), 128)
    fp = _round_up(fin, 128)
    hp = _round_up(h, 128)
    cp = _round_up(c, 128)

    f32, bf16 = jnp.float32, jnp.bfloat16

    def pad2(arr, rows, cols):
        out = jnp.zeros((rows, cols), f32)
        return out.at[:arr.shape[0], :arr.shape[1]].set(arr.astype(f32))

    x_p = pad2(x, s1p, fp).astype(bf16)
    a1n = pad2(a1 / deg1, d1p, s1p).astype(bf16)      # degree folded on host
    a2n = pad2(a2 / deg2, d2p, d1p).astype(bf16)
    w1c = jnp.concatenate([pad2(w1s, fp, hp), pad2(w1n, fp, hp)], axis=0).astype(bf16)
    w2c = jnp.concatenate([pad2(w2s, hp, cp), pad2(w2n, hp, cp)], axis=0).astype(bf16)
    b1p = pad2(b1.reshape(1, -1), 1, hp)
    b2p = pad2(b2.reshape(1, -1), 1, cp)

    dims = dict(tm1=tm1, d1=d1, d2=d2, c=c,
                d1p=d1p, d2p=d2p, s1p=s1p, fp=fp, hp=hp, cp=cp)
    return (x_p, a1n, a2n, w1c, b1p, w2c, b2p), dims


def sage_model_forward(x, a1, deg1, a2, deg2, params, *, tm1=128):
    """Fused 2-layer GraphSAGE forward pass (layer1 + ReLU + layer2 + log_softmax)."""
    ops, dm = _prepare(x, a1, deg1, a2, deg2, params, tm1)
    x_p, a1n, a2n, w1c, b1p, w2c, b2p = ops
    tm1 = dm["tm1"]
    n_blk = dm["d1p"] // tm1

    def resident(shape):
        return pl.BlockSpec(shape, lambda i: (0, 0))

    kernel = functools.partial(_sage_model_kernel, tm1=tm1, num_classes=dm["c"])

    out = pl.pallas_call(
        kernel,
        out_shape=jax.ShapeDtypeStruct((dm["d2p"], dm["cp"]), jnp.float32),
        grid_spec=pltpu.PrefetchScalarGridSpec(
            num_scalar_prefetch=0,
            grid=(n_blk,),
            in_specs=[
                resident(x_p.shape),                                # x: resident
                pl.BlockSpec((tm1, dm["s1p"]), lambda i: (i, 0)),   # A1: streamed row blocks
                resident(a2n.shape),                                # A2: resident
                resident(w1c.shape),
                resident(b1p.shape),
                resident(w2c.shape),
                resident(b2p.shape),
            ],
            out_specs=pl.BlockSpec((dm["d2p"], dm["cp"]), lambda i: (0, 0)),
            scratch_shapes=[
                pltpu.VMEM((dm["d1p"], dm["hp"]), jnp.float32),        # h1 activations
                pltpu.VMEM((tm1, 2 * dm["fp"]), jnp.bfloat16),         # fused layer-1 operand
                pltpu.VMEM((dm["d2p"], 2 * dm["hp"]), jnp.bfloat16),   # fused layer-2 operand
            ],
        ),
        compiler_params=pltpu.CompilerParams(
            dimension_semantics=("arbitrary",),   # h1 scratch carried across dst blocks
            vmem_limit_bytes=48 * 1024 * 1024,    # above 16/32 MiB defaults, under v7x 64 MiB
        ),
    )(x_p, a1n, a2n, w1c, b1p, w2c, b2p)

    return out[:dm["d2"], :dm["c"]]


def _reference(x, a1, deg1, a2, deg2, params, *, tm1=128):
    """Plain-JAX reference mirroring the kernel's exact bf16/f32 math."""
    ops, dm = _prepare(x, a1, deg1, a2, deg2, params, tm1)
    x_p, a1n, a2n, w1c, b1p, w2c, b2p = ops
    f32, bf16 = jnp.float32, jnp.bfloat16

    neigh1 = jnp.dot(a1n, x_p, preferred_element_type=f32)
    z1 = jnp.concatenate([x_p[:dm["d1p"]], neigh1.astype(bf16)], axis=1)
    h1 = jnp.maximum(jnp.dot(z1, w1c, preferred_element_type=f32) + b1p, 0.0)

    h1b = h1.astype(bf16)
    neigh2 = jnp.dot(a2n, h1b, preferred_element_type=f32)
    z2 = jnp.concatenate([h1b[:dm["d2p"]], neigh2.astype(bf16)], axis=1)
    h2 = jnp.dot(z2, w2c, preferred_element_type=f32) + b2p

    h2 = h2[:dm["d2"], :dm["c"]]
    return jax.nn.log_softmax(h2, axis=1)


if __name__ == "__main__":
    key = jax.random.PRNGKey(0)

    # Small synthetic shapes (MFG-0: 48 src -> 32 dst ; MFG-1: 32 src -> 8 dst).
    in_feats, h_feats, num_classes = 16, 32, 4
    n_src1, n_dst1, n_dst2 = 48, 32, 8

    ks = jax.random.split(key, 10)

    x = jax.random.normal(ks[0], (n_src1, in_feats), dtype=jnp.float32)

    mask1 = (jax.random.uniform(ks[1], (n_dst1, n_src1)) < 0.4).astype(jnp.float32)
    ew1 = jax.random.uniform(ks[2], (n_dst1, n_src1), dtype=jnp.float32)
    a1 = mask1 * ew1
    deg1 = jnp.maximum(jnp.sum(mask1, axis=1, keepdims=True), 1.0)

    mask2 = (jax.random.uniform(ks[3], (n_dst2, n_dst1)) < 0.5).astype(jnp.float32)
    ew2 = jax.random.uniform(ks[4], (n_dst2, n_dst1), dtype=jnp.float32)
    a2 = mask2 * ew2
    deg2 = jnp.maximum(jnp.sum(mask2, axis=1, keepdims=True), 1.0)

    def init_w(k, fan_in, fan_out):
        lim = 1.0 / jnp.sqrt(jnp.float32(fan_in))
        return jax.random.uniform(k, (fan_in, fan_out), jnp.float32, -lim, lim)

    w1_self = init_w(ks[5], in_feats, h_feats)
    w1_neigh = init_w(ks[6], in_feats, h_feats)
    b1 = jnp.zeros((1, h_feats), jnp.float32)
    w2_self = init_w(ks[7], h_feats, num_classes)
    w2_neigh = init_w(ks[8], h_feats, num_classes)
    b2 = jnp.zeros((1, num_classes), jnp.float32)
    params = (w1_self, w1_neigh, b1, w2_self, w2_neigh, b2)

    # tm1=16 -> 2 dst-row blocks, exercising the streamed-adjacency grid path.
    out = sage_model_forward(x, a1, deg1, a2, deg2, params, tm1=16)
    out = jax.block_until_ready(out)

    ref = _reference(x, a1, deg1, a2, deg2, params, tm1=16)
    assert out.shape == (n_dst2, num_classes)
    assert jnp.allclose(out, ref, atol=1e-3, rtol=1e-3), "mismatch vs bf16-matched reference"

    # Loose sanity check against the original full-f32 math (torch semantics).
    h = x[:n_dst1] @ w1_self + ((a1 @ x) / deg1) @ w1_neigh + b1
    h = jnp.maximum(h, 0.0)
    h = h[:n_dst2] @ w2_self + ((a2 @ h) / deg2) @ w2_neigh + b2
    ref_f32 = jax.nn.log_softmax(h, axis=1)
    assert jnp.allclose(out, ref_f32, atol=1e-1), "semantic drift vs f32 reference"

    print("KERNEL_OK")
</pallas_src>

<mosaic_0001>
module attributes {stable_mosaic.version = 11 : i64} {
  func.func @_sage_model_kernel(%arg0: i32, %arg1: memref<128x128xbf16, #tpu.memory_space<vmem>>, %arg2: memref<16x128xbf16, #tpu.memory_space<vmem>>, %arg3: memref<8x32xbf16, #tpu.memory_space<vmem>>, %arg4: memref<256x128xbf16, #tpu.memory_space<vmem>>, %arg5: memref<1x128xf32, #tpu.memory_space<vmem>>, %arg6: memref<256x128xbf16, #tpu.memory_space<vmem>>, %arg7: memref<1x128xf32, #tpu.memory_space<vmem>>, %arg8: memref<8x128xf32, #tpu.memory_space<vmem>>, %arg9: memref<32x128xf32, #tpu.memory_space<vmem>>, %arg10: memref<16x256xbf16, #tpu.memory_space<vmem>>, %arg11: memref<8x256xbf16, #tpu.memory_space<vmem>>) attributes {dimension_semantics = [#tpu.dimension_semantics<arbitrary>], iteration_bounds = array<i64: 2>, scalar_prefetch = 0 : i64, scratch_operands = 3 : i64, tpu.core_type = #tpu.core_type<tc>, window_params = [{pipeline_mode = #tpu.pipeline_mode<synchronous>, transform_indices = @transform_0, window_bounds = array<i64: 128, 128>}, {transform_indices = @transform_1, window_bounds = array<i64: 16, 128>}, {pipeline_mode = #tpu.pipeline_mode<synchronous>, transform_indices = @transform_2, window_bounds = array<i64: 8, 32>}, {pipeline_mode = #tpu.pipeline_mode<synchronous>, transform_indices = @transform_3, window_bounds = array<i64: 256, 128>}, {pipeline_mode = #tpu.pipeline_mode<synchronous>, transform_indices = @transform_4, window_bounds = array<i64: 1, 128>}, {pipeline_mode = #tpu.pipeline_mode<synchronous>, transform_indices = @transform_5, window_bounds = array<i64: 256, 128>}, {pipeline_mode = #tpu.pipeline_mode<synchronous>, transform_indices = @transform_6, window_bounds = array<i64: 1, 128>}, {pipeline_mode = #tpu.pipeline_mode<synchronous>, transform_indices = @transform_7, window_bounds = array<i64: 8, 128>}]} {
    %c16_i32 = arith.constant 16 : i32
    %0 = arith.muli %arg0, %c16_i32 : i32
    %1 = tpu.assume_multiple %0, 16 : i32
    %c0 = arith.constant 0 : index
    %c0_0 = arith.constant 0 : index
    %2 = vector.load %arg2[%c0, %c0_0] : memref<16x128xbf16, #tpu.memory_space<vmem>>, vector<16x128xbf16>
    %c0_1 = arith.constant 0 : index
    %c0_2 = arith.constant 0 : index
    %3 = vector.load %arg1[%c0_1, %c0_2] : memref<128x128xbf16, #tpu.memory_space<vmem>>, vector<128x128xbf16>
    %cst = arith.constant dense<0.000000e+00> : vector<16x128xf32>
    %4 = tpu.matmul %2, %3, %cst {dimension_numbers = #tpu.dot_dimension_numbers<[1], [0], [0], [1], [0, 0, 1, 1], [], []>} : vector<16x128xbf16>, vector<128x128xbf16>, vector<16x128xf32> -> vector<16x128xf32>
    %5 = arith.index_cast %1 : i32 to index
    %c0_3 = arith.constant 0 : index
    %6 = vector.load %arg1[%5, %c0_3] : memref<128x128xbf16, #tpu.memory_space<vmem>>, vector<16x128xbf16>
    %c0_4 = arith.constant 0 : index
    %c0_5 = arith.constant 0 : index
    %7 = vector.load %arg10[%c0_4, %c0_5] : memref<16x256xbf16, #tpu.memory_space<vmem>>, vector<16x128xbf16>
    tpu.vector_store %arg10[%c0_4, %c0_5], %6 {strides = array<i32>} : memref<16x256xbf16, #tpu.memory_space<vmem>>, vector<16x128xbf16>,
    %8 = arith.truncf %4 : vector<16x128xf32> to vector<16x128xbf16>
    %c0_6 = arith.constant 0 : index
    %c128 = arith.constant 128 : index
    %9 = vector.load %arg10[%c0_6, %c128] : memref<16x256xbf16, #tpu.memory_space<vmem>>, vector<16x128xbf16>
    tpu.vector_store %arg10[%c0_6, %c128], %8 {strides = array<i32>} : memref<16x256xbf16, #tpu.memory_space<vmem>>, vector<16x128xbf16>,
    %c0_7 = arith.constant 0 : index
    %c0_8 = arith.constant 0 : index
    %10 = vector.load %arg10[%c0_7, %c0_8] : memref<16x256xbf16, #tpu.memory_space<vmem>>, vector<16x256xbf16>
    %c0_9 = arith.constant 0 : index
    %c0_10 = arith.constant 0 : index
    %11 = vector.load %arg4[%c0_9, %c0_10] : memref<256x128xbf16, #tpu.memory_space<vmem>>, vector<256x128xbf16>
    %cst_11 = arith.constant dense<0.000000e+00> : vector<16x128xf32>
    %12 = tpu.matmul %10, %11, %cst_11 {dimension_numbers = #tpu.dot_dimension_numbers<[1], [0], [0], [1], [0, 0, 1, 1], [], []>} : vector<16x256xbf16>, vector<256x128xbf16>, vector<16x128xf32> -> vector<16x128xf32>
    %c0_12 = arith.constant 0 : index
    %c0_13 = arith.constant 0 : index
    %13 = vector.load %arg5[%c0_12, %c0_13] : memref<1x128xf32, #tpu.memory_space<vmem>>, vector<1x128xf32>
    %14 = vector.broadcast %13 : vector<1x128xf32> to vector<16x128xf32>
    %15 = arith.addf %12, %14 : vector<16x128xf32>
    %cst_14 = arith.constant 0.000000e+00 : f32
    %16 = vector.broadcast %cst_14 : f32 to vector<16x128xf32>
    %17 = arith.maximumf %15, %16 : vector<16x128xf32>
    %18 = arith.index_cast %1 : i32 to index
    %c0_15 = arith.constant 0 : index
    %19 = vector.load %arg9[%18, %c0_15] : memref<32x128xf32, #tpu.memory_space<vmem>>, vector<16x128xf32>
    tpu.vector_store %arg9[%18, %c0_15], %17 {strides = array<i32>} : memref<32x128xf32, #tpu.memory_space<vmem>>, vector<16x128xf32>,
    %c1_i32 = arith.constant 1 : i32
    %20 = arith.cmpi eq, %arg0, %c1_i32 : i32
    %21 = arith.extui %20 : i1 to i32
    %c0_i32 = arith.constant 0 : i32
    %22 = arith.cmpi ne, %21, %c0_i32 : i32
    scf.if %22 {
      %c0_16 = arith.constant 0 : index
      %c0_17 = arith.constant 0 : index
      %23 = vector.load %arg9[%c0_16, %c0_17] : memref<32x128xf32, #tpu.memory_space<vmem>>, vector<32x128xf32>
      %24 = arith.truncf %23 : vector<32x128xf32> to vector<32x128xbf16>
      %c0_18 = arith.constant 0 : index
      %c0_19 = arith.constant 0 : index
      %25 = vector.load %arg3[%c0_18, %c0_19] : memref<8x32xbf16, #tpu.memory_space<vmem>>, vector<8x32xbf16>
      %cst_20 = arith.constant dense<0.000000e+00> : vector<8x128xf32>
      %26 = tpu.matmul %25, %24, %cst_20 {dimension_numbers = #tpu.dot_dimension_numbers<[1], [0], [0], [1], [0, 0, 1, 1], [], []>} : vector<8x32xbf16>, vector<32x128xbf16>, vector<8x128xf32> -> vector<8x128xf32>
      %27 = vector.extract_strided_slice %24 {offsets = [0, 0], sizes = [8, 128], strides = [1, 1]} : vector<32x128xbf16> to vector<8x128xbf16>
      %c0_21 = arith.constant 0 : index
      %c0_22 = arith.constant 0 : index
      %28 = vector.load %arg11[%c0_21, %c0_22] : memref<8x256xbf16, #tpu.memory_space<vmem>>, vector<8x128xbf16>
      tpu.vector_store %arg11[%c0_21, %c0_22], %27 {strides = array<i32>} : memref<8x256xbf16, #tpu.memory_space<vmem>>, vector<8x128xbf16>,
      %29 = arith.truncf %26 : vector<8x128xf32> to vector<8x128xbf16>
      %c0_23 = arith.constant 0 : index
      %c128_24 = arith.constant 128 : index
      %30 = vector.load %arg11[%c0_23, %c128_24] : memref<8x256xbf16, #tpu.memory_space<vmem>>, vector<8x128xbf16>
      tpu.vector_store %arg11[%c0_23, %c128_24], %29 {strides = array<i32>} : memref<8x256xbf16, #tpu.memory_space<vmem>>, vector<8x128xbf16>,
      %c0_25 = arith.constant 0 : index
      %c0_26 = arith.constant 0 : index
      %31 = vector.load %arg11[%c0_25, %c0_26] : memref<8x256xbf16, #tpu.memory_space<vmem>>, vector<8x256xbf16>
      %c0_27 = arith.constant 0 : index
      %c0_28 = arith.constant 0 : index
      %32 = vector.load %arg6[%c0_27, %c0_28] : memref<256x128xbf16, #tpu.memory_space<vmem>>, vector<256x128xbf16>
      %cst_29 = arith.constant dense<0.000000e+00> : vector<8x128xf32>
      %33 = tpu.matmul %31, %32, %cst_29 {dimension_numbers = #tpu.dot_dimension_numbers<[1], [0], [0], [1], [0, 0, 1, 1], [], []>} : vector<8x256xbf16>, vector<256x128xbf16>, vector<8x128xf32> -> vector<8x128xf32>
      %c0_30 = arith.constant 0 : index
      %c0_31 = arith.constant 0 : index
      %34 = vector.load %arg7[%c0_30, %c0_31] : memref<1x128xf32, #tpu.memory_space<vmem>>, vector<1x128xf32>
      %35 = vector.broadcast %34 : vector<1x128xf32> to vector<8x128xf32>
      %36 = arith.addf %33, %35 : vector<8x128xf32>
      %37 = tpu.iota {dimensions = array<i32: 1>} : vector<8x128xi32>
      %c4_i32 = arith.constant 4 : i32
      %38 = vector.broadcast %c4_i32 : i32 to vector<8x128xi32>
      %39 = arith.cmpi slt, %37, %38 : vector<8x128xi32>
      %cst_32 = arith.constant -1.000000e+30 : f32
      %40 = vector.broadcast %cst_32 : f32 to vector<8x128xf32>
      %41 = arith.select %39, %36, %40 : vector<8x128xi1>, vector<8x128xf32>
      %cst_33 = arith.constant dense<0xFF800000> : vector<8xf32>
      %42 = vector.multi_reduction <maximumf>, %41, %cst_33 [1] : vector<8x128xf32> to vector<8xf32>
      %43 = vector.shape_cast %42 : vector<8xf32> to vector<8x1xf32>
      %44 = vector.broadcast %43 : vector<8x1xf32> to vector<8x128xf32>
      %45 = arith.subf %41, %44 : vector<8x128xf32>
      %46 = math.exp %45 : vector<8x128xf32>
      %cst_34 = arith.constant dense<0.000000e+00> : vector<8xf32>
      %47 = vector.multi_reduction <add>, %46, %cst_34 [1] : vector<8x128xf32> to vector<8xf32>
      %48 = vector.shape_cast %47 : vector<8xf32> to vector<8x1xf32>
      %49 = math.log %48 : vector<8x1xf32>
      %50 = vector.broadcast %49 : vector<8x1xf32> to vector<8x128xf32>
      %51 = arith.subf %45, %50 : vector<8x128xf32>
      %c0_35 = arith.constant 0 : index
      %c0_36 = arith.constant 0 : index
      %52 = vector.load %arg8[%c0_35, %c0_36] : memref<8x128xf32, #tpu.memory_space<vmem>>, vector<8x128xf32>
      tpu.vector_store %arg8[%c0_35, %c0_36], %51 {strides = array<i32>} : memref<8x128xf32, #tpu.memory_space<vmem>>, vector<8x128xf32>,
    } else {
    }
    return
  }
  func.func @transform_0(%arg0: i32) -> (i32, i32) {
    %c0_i32 = arith.constant 0 : i32
    %c0_i32_0 = arith.constant 0 : i32
    %c0_i32_1 = arith.constant 0 : i32
    return %c0_i32, %c0_i32_0 : i32, i32
  }
  func.func @transform_1(%arg0: i32) -> (i32, i32) {
    %c0_i32 = arith.constant 0 : i32
    %c0_i32_0 = arith.constant 0 : i32
    return %arg0, %c0_i32 : i32, i32
  }
  func.func @transform_2(%arg0: i32) -> (i32, i32) {
    %c0_i32 = arith.constant 0 : i32
    %c0_i32_0 = arith.constant 0 : i32
    %c0_i32_1 = arith.constant 0 : i32
    return %c0_i32, %c0_i32_0 : i32, i32
  }
  func.func @transform_3(%arg0: i32) -> (i32, i32) {
    %c0_i32 = arith.constant 0 : i32
    %c0_i32_0 = arith.constant 0 : i32
    %c0_i32_1 = arith.constant 0 : i32
    return %c0_i32, %c0_i32_0 : i32, i32
  }
  func.func @transform_4(%arg0: i32) -> (i32, i32) {
    %c0_i32 = arith.constant 0 : i32
    %c0_i32_0 = arith.constant 0 : i32
    %c0_i32_1 = arith.constant 0 : i32
    return %c0_i32, %c0_i32_0 : i32, i32
  }
  func.func @transform_5(%arg0: i32) -> (i32, i32) {
    %c0_i32 = arith.constant 0 : i32
    %c0_i32_0 = arith.constant 0 : i32
    %c0_i32_1 = arith.constant 0 : i32
    return %c0_i32, %c0_i32_0 : i32, i32
  }
  func.func @transform_6(%arg0: i32) -> (i32, i32) {
    %c0_i32 = arith.constant 0 : i32
    %c0_i32_0 = arith.constant 0 : i32
    %c0_i32_1 = arith.constant 0 : i32
    return %c0_i32, %c0_i32_0 : i32, i32
  }
  func.func @transform_7(%arg0: i32) -> (i32, i32) {
    %c0_i32 = arith.constant 0 : i32
    %c0_i32_0 = arith.constant 0 : i32
    %c0_i32_1 = arith.constant 0 : i32
    return %c0_i32, %c0_i32_0 : i32, i32
  }
}

</mosaic_0001>

<llo_original>
// kernel: tpu_custom_call.1
$region0: #{tpu_custom_call.1}
  #allocation0 [shape = 'u32[]', space=smem, size = 0x4, offset = 0x4, fixed_abs, tag = 'smem constant byte address 0x4 - core index']
  #allocation1 [shape = 'u32[144,128]{1,0:T(1,128)}', space=vmem, size = 0x12000, scoped, tag = 'internal scratch']
  #allocation2 [shape = 'f32[32,128]{1,0:T(8,128)}', space=vmem, size = 0x4000, scoped, tag = 'scratch operand']
  #allocation3 [shape = 'bf16[16,256]{1,0:T(16,128)(2,1)}', space=vmem, size = 0x2000, scoped, tag = 'scratch operand']
  #allocation4 [shape = 'bf16[8,256]{1,0:T(8,128)(2,1)}', space=vmem, size = 0x1000, scoped, tag = 'scratch operand']
  %s0 = inlined_call_operand.hbm [shape: bf16[128,128], index: 0, kind: input, shape index: {}]
  %s1 = inlined_call_operand.hbm [shape: bf16[32,128], index: 1, kind: input, shape index: {}]
  %s2 = inlined_call_operand.vmem [shape: bf16[8,32], index: 2, kind: input, shape index: {}]
  %s3 = inlined_call_operand.hbm [shape: bf16[256,128], index: 3, kind: input, shape index: {}]
  %s4 = inlined_call_operand.vmem [shape: f32[1,128], index: 4, kind: input, shape index: {}]
  %s5 = inlined_call_operand.hbm [shape: bf16[256,128], index: 5, kind: input, shape index: {}]
  %s6 = inlined_call_operand.vmem [shape: f32[1,128], index: 6, kind: input, shape index: {}]
  %s7 = inlined_call_operand.hbm [shape: f32[8,128], index: 7, kind: output, shape index: {}]
  %s8 = sld [smem:[#allocation0]]
  $region81: #{tpu_custom_call.1} parent=0
    _
  %s10 = ssub.s32 1, %s8
  %s11 = scalar_select 0, %s10, %s8
  $region1: #{tpu_custom_call.1} parent=0
    #allocation5 [shape = 'u8[32768]{0}', space=vmem, size = 0x8000, scoped, tag = 'input window, operand 0, single buffered']
    #allocation6 [shape = 's32[2]{0}', space=sflag, size = 0x8, scoped, tag = 'scoped memory for tpu_custom_call.1']
    #allocation7 [shape = 's32[2]{0}', space=sflag, size = 0x8, scoped, tag = 'scoped memory for tpu_custom_call.1']
    #allocation8 [shape = 'u8[8192]{0}', space=vmem, size = 0x2000, scoped, tag = 'input window, operand 1']
    #allocation9 [shape = 's32[2]{0}', space=sflag, size = 0x8, scoped, tag = 'scoped memory for tpu_custom_call.1']
    #allocation10 [shape = 'u8[65536]{0}', space=vmem, size = 0x10000, scoped, tag = 'input window, operand 3, single buffered']
    #allocation11 [shape = 'u8[65536]{0}', space=vmem, size = 0x10000, scoped, tag = 'input window, operand 5, single buffered']
    #allocation12 [shape = 's32[1]{0}', space=sflag, size = 0x4, scoped, tag = 'scoped memory for tpu_custom_call.1']
    #allocation13 [shape = 'u8[4096]{0}', space=vmem, size = 0x1000, scoped, tag = 'output window, operand 0, single buffered']
    %12 = vsyncpa [#allocation6], 0
    %13 = vsyncpa [#allocation9], 0
    %s14 = scalar_lea.sflag [#allocation9], 1
    %15 = vsyncpa %s14, 0
    %16 = vsyncpa [#allocation12], 0
    %17 = vsyncpa [#allocation7], 0
    loop: start=0, step=1, limit=4
    $region2: #{tpu_custom_call.1} parent=1 // loop_pre_header
      _
    $region3: #{tpu_custom_call.1} parent=1 // loop_header
      %s19 = sphi 0, %s23
      %p20 = scmp.ge.s32.totalorder %s19, 4
      %s27 = sphi 0, %s27
      %s29 = sphi 0, %s27
      %s30 = sphi 0, %s29
      %s44 = sphi 0, %s30
      %s50 = sphi 0, %s52
      %s53 = sphi 0, %s50
      %s54 = sphi 0, %s53
      %s70 = sphi 0, %s54
      %s74 = sphi 0, %s74
      %s76 = sphi 0, %s74
      %s77 = sphi 0, %s76
      %s91 = sphi 0, %s77
      %s95 = sphi 0, %s95
      %s97 = sphi 0, %s95
      %s98 = sphi 0, %s97
      %s112 = sphi 0, %s98
      %s116 = sphi 0, %s116
      %s118 = sphi 0, %s116
      %s119 = sphi 0, %s118
      %s133 = sphi 0, %s119
      %s137 = sphi 0, %s137
      %s139 = sphi 0, %s137
      %s140 = sphi 0, %s139
      %s154 = sphi 0, %s140
      %s158 = sphi 0, %s158
      %s160 = sphi 0, %s158
      %s161 = sphi 0, %s160
      %s175 = sphi 0, %s161
      %s179 = sphi 0, %s179
      %s181 = sphi 0, %s179
      %s182 = sphi 0, %s181
      %s196 = sphi 0, %s182
    $region4: #{tpu_custom_call.1} parent=1 // loop_header_branch
      %22 = sbr.rel (%p20) target = $region8
    $region5: #{tpu_custom_call.1} parent=1 // loop_body
      %s24 = ssub.s32 %s19, 1
      %s25 = ssub.s32 %s19, 2
      %s26 = sadd.s32 %s19, 1
      %s28 = sadd.s32 %s27, 1
      %p31 = scmp.eq.s32.totalorder %s19, 1
      %p32 = scmp.ne.s32.totalorder %s27, %s29
      %p33 = scmp.eq.s32.totalorder %s19, 0
      %p34 = por %p32, %p33
      %p35 = scmp.ne.s32.totalorder %s27, %s29
      %p36 = scmp.eq.s32.totalorder %s24, 1
      %p37 = por %p35, %p36
      %p38 = scmp.ne.s32.totalorder %s29, %s30
      %p39 = scmp.eq.s32.totalorder %s24, 0
      %p40 = por %p38, %p39
      %p41 = scmp.ne.s32.totalorder %s29, %s30
      %p42 = scmp.eq.s32.totalorder %s25, 1
      %p43 = por %p41, %p42
      %p45 = scmp.ne.s32.totalorder %s30, %s44
      %p46 = scmp.eq.s32.totalorder %s25, 0
      %p47 = por %p45, %p46
      %s48 = ssub.s32 %s19, %s26
      %p49 = scmp.eq.s32.totalorder %s48, 0
      %s51 = sadd.s32 %s50, 1
      %s52 = scalar_select %p49, %s50, %s51
      %p55 = pneg %p49
      %p56 = scmp.eq.s32.totalorder %s19, 1
      %p57 = por %p55, %p56
      %p58 = scmp.ne.s32.totalorder %s50, %s53
      %p59 = scmp.eq.s32.totalorder %s19, 0
      %p60 = por %p58, %p59
      %p61 = scmp.ne.s32.totalorder %s50, %s53
      %p62 = scmp.eq.s32.totalorder %s24, 1
      %p63 = por %p61, %p62
      %p64 = scmp.ne.s32.totalorder %s53, %s54
      %p65 = scmp.eq.s32.totalorder %s24, 0
      %p66 = por %p64, %p65
      %p67 = scmp.ne.s32.totalorder %s53, %s54
      %p68 = scmp.eq.s32.totalorder %s25, 1
      %p69 = por %p67, %p68
      %p71 = scmp.ne.s32.totalorder %s54, %s70
      %p72 = scmp.eq.s32.totalorder %s25, 0
      %p73 = por %p71, %p72
      %s75 = sadd.s32 %s74, 1
      %p78 = scmp.eq.s32.totalorder %s19, 1
      %p79 = scmp.ne.s32.totalorder %s74, %s76
      %p80 = scmp.eq.s32.totalorder %s19, 0
      %p81 = por %p79, %p80
      %p82 = scmp.ne.s32.totalorder %s74, %s76
      %p83 = scmp.eq.s32.totalorder %s24, 1
      %p84 = por %p82, %p83
      %p85 = scmp.ne.s32.totalorder %s76, %s77
      %p86 = scmp.eq.s32.totalorder %s24, 0
      %p87 = por %p85, %p86
      %p88 = scmp.ne.s32.totalorder %s76, %s77
      %p89 = scmp.eq.s32.totalorder %s25, 1
      %p90 = por %p88, %p89
      %p92 = scmp.ne.s32.totalorder %s77, %s91
      %p93 = scmp.eq.s32.totalorder %s25, 0
      %p94 = por %p92, %p93
      %s96 = sadd.s32 %s95, 1
      %p99 = scmp.eq.s32.totalorder %s19, 1
      %p100 = scmp.ne.s32.totalorder %s95, %s97
      %p101 = scmp.eq.s32.totalorder %s19, 0
      %p102 = por %p100, %p101
      %p103 = scmp.ne.s32.totalorder %s95, %s97
      %p104 = scmp.eq.s32.totalorder %s24, 1
      %p105 = por %p103, %p104
      %p106 = scmp.ne.s32.totalorder %s97, %s98
      %p107 = scmp.eq.s32.totalorder %s24, 0
      %p108 = por %p106, %p107
      %p109 = scmp.ne.s32.totalorder %s97, %s98
      %p110 = scmp.eq.s32.totalorder %s25, 1
      %p111 = por %p109, %p110
      %p113 = scmp.ne.s32.totalorder %s98, %s112
      %p114 = scmp.eq.s32.totalorder %s25, 0
      %p115 = por %p113, %p114
      %s117 = sadd.s32 %s116, 1
      %p120 = scmp.eq.s32.totalorder %s19, 1
      %p121 = scmp.ne.s32.totalorder %s116, %s118
      %p122 = scmp.eq.s32.totalorder %s19, 0
      %p123 = por %p121, %p122
      %p124 = scmp.ne.s32.totalorder %s116, %s118
      %p125 = scmp.eq.s32.totalorder %s24, 1
      %p126 = por %p124, %p125
      %p127 = scmp.ne.s32.totalorder %s118, %s119
      %p128 = scmp.eq.s32.totalorder %s24, 0
      %p129 = por %p127, %p128
      %p130 = scmp.ne.s32.totalorder %s118, %s119
      %p131 = scmp.eq.s32.totalorder %s25, 1
      %p132 = por %p130, %p131
      %p134 = scmp.ne.s32.totalorder %s119, %s133
      %p135 = scmp.eq.s32.totalorder %s25, 0
      %p136 = por %p134, %p135
      %s138 = sadd.s32 %s137, 1
      %p141 = scmp.eq.s32.totalorder %s19, 1
      %p142 = scmp.ne.s32.totalorder %s137, %s139
      %p143 = scmp.eq.s32.totalorder %s19, 0
      %p144 = por %p142, %p143
      %p145 = scmp.ne.s32.totalorder %s137, %s139
      %p146 = scmp.eq.s32.totalorder %s24, 1
      %p147 = por %p145, %p146
      %p148 = scmp.ne.s32.totalorder %s139, %s140
      %p149 = scmp.eq.s32.totalorder %s24, 0
      %p150 = por %p148, %p149
      %p151 = scmp.ne.s32.totalorder %s139, %s140
      %p152 = scmp.eq.s32.totalorder %s25, 1
      %p153 = por %p151, %p152
      %p155 = scmp.ne.s32.totalorder %s140, %s154
      %p156 = scmp.eq.s32.totalorder %s25, 0
      %p157 = por %p155, %p156
      %s159 = sadd.s32 %s158, 1
      %p162 = scmp.eq.s32.totalorder %s19, 1
      %p163 = scmp.ne.s32.totalorder %s158, %s160
      %p164 = scmp.eq.s32.totalorder %s19, 0
      %p165 = por %p163, %p164
      %p166 = scmp.ne.s32.totalorder %s158, %s160
      %p167 = scmp.eq.s32.totalorder %s24, 1
      %p168 = por %p166, %p167
      %p169 = scmp.ne.s32.totalorder %s160, %s161
      %p170 = scmp.eq.s32.totalorder %s24, 0
      %p171 = por %p169, %p170
      %p172 = scmp.ne.s32.totalorder %s160, %s161
      %p173 = scmp.eq.s32.totalorder %s25, 1
      %p174 = por %p172, %p173
      %p176 = scmp.ne.s32.totalorder %s161, %s175
      %p177 = scmp.eq.s32.totalorder %s25, 0
      %p178 = por %p176, %p177
      %s180 = sadd.s32 %s179, 1
      %p183 = scmp.eq.s32.totalorder %s19, 1
      %p184 = scmp.ne.s32.totalorder %s179, %s181
      %p185 = scmp.eq.s32.totalorder %s19, 0
      %p186 = por %p184, %p185
      %p187 = scmp.ne.s32.totalorder %s179, %s181
      %p188 = scmp.eq.s32.totalorder %s24, 1
      %p189 = por %p187, %p188
      %p190 = scmp.ne.s32.totalorder %s181, %s182
      %p191 = scmp.eq.s32.totalorder %s24, 0
      %p192 = por %p190, %p191
      %p193 = scmp.ne.s32.totalorder %s181, %s182
      %p194 = scmp.eq.s32.totalorder %s25, 1
      %p195 = por %p193, %p194
      %p197 = scmp.ne.s32.totalorder %s182, %s196
      %p198 = scmp.eq.s32.totalorder %s25, 0
      %p199 = por %p197, %p198
      %p200 = scmp.le.s32.totalorder 1, %s19
      %p201 = scmp.lt.s32.totalorder %s19, 3
      %p202 = pnand %p200, %p201
      %p203 = pneg %p202
      // Predicated region
      $region9: #{tpu_custom_call.1} parent=5 // pred_check
        _
      $region10: #{tpu_custom_call.1} parent=5 // pred_check_branch
        %205 = sbr.rel (%p202) target = $region12
      $region11: #{tpu_custom_call.1} parent=5 // pred_region
        %s206 = ssub.s32 %s19, 1
        // Predicated region
        $region13: #{tpu_custom_call.1} parent=11 // pred_check
          %p207 = pneg %p40
        $region14: #{tpu_custom_call.1} parent=11 // pred_check_branch
          %209 = sbr.rel (%p207) target = $region16
        $region15: #{tpu_custom_call.1} parent=11 // pred_region
          %s211 = ssub.s32 1024, 1024
          %212 = vsyncadd [#allocation6], %s211
          %s213 = sshll.u32 [#allocation5], 4
          %s214 = int_to_ptr.vmem [resolvable:$true] %s213
          %219 = dma.hbm_to_vmem [thread:$0]  %s0, 1024, %s214, [#allocation6], 64, 64, 4
        $region16: #{tpu_custom_call.1} parent=11 // pred_fallthru
          _
        // Predicated region
        $region17: #{tpu_custom_call.1} parent=11 // pred_check
          %p220 = pneg %p87
        $region18: #{tpu_custom_call.1} parent=11 // pred_check_branch
          %222 = sbr.rel (%p220) target = $region20
        $region19: #{tpu_custom_call.1} parent=11 // pred_region
          _
        $region20: #{tpu_custom_call.1} parent=11 // pred_fallthru
          _
        // Predicated region
        $region21: #{tpu_custom_call.1} parent=11 // pred_check
          %p223 = pneg %p108
        $region22: #{tpu_custom_call.1} parent=11 // pred_check_branch
          %225 = sbr.rel (%p223) target = $region24
        $region23: #{tpu_custom_call.1} parent=11 // pred_region
          %s227 = ssub.s32 2048, 2048
          %228 = vsyncadd [#allocation9], %s227
          %s229 = sshll.u32 [#allocation10], 4
          %s230 = int_to_ptr.vmem [resolvable:$true] %s229
          %235 = dma.hbm_to_vmem [thread:$0]  %s3, 2048, %s230, [#allocation9], 64, 64, 4
        $region24: #{tpu_custom_call.1} parent=11 // pred_fallthru
          _
        // Predicated region
        $region25: #{tpu_custom_call.1} parent=11 // pred_check
          %p236 = pneg %p129
        $region26: #{tpu_custom_call.1} parent=11 // pred_check_branch
          %238 = sbr.rel (%p236) target = $region28
        $region27: #{tpu_custom_call.1} parent=11 // pred_region
          _
        $region28: #{tpu_custom_call.1} parent=11 // pred_fallthru
          _
        // Predicated region
        $region29: #{tpu_custom_call.1} parent=11 // pred_check
          %p239 = pneg %p150
        $region30: #{tpu_custom_call.1} parent=11 // pred_check_branch
          %241 = sbr.rel (%p239) target = $region32
        $region31: #{tpu_custom_call.1} parent=11 // pred_region
          %s243 = ssub.s32 2048, 2048
          %244 = vsyncadd [#allocation12], %s243
          %s245 = sshll.u32 [#allocation11], 4
          %s246 = int_to_ptr.vmem [resolvable:$true] %s245
          %251 = dma.hbm_to_vmem [thread:$0]  %s5, 2048, %s246, [#allocation12], 64, 64, 4
        $region32: #{tpu_custom_call.1} parent=11 // pred_fallthru
          _
        // Predicated region
        $region33: #{tpu_custom_call.1} parent=11 // pred_check
          %p252 = pneg %p171
        $region34: #{tpu_custom_call.1} parent=11 // pred_check_branch
          %254 = sbr.rel (%p252) target = $region36
        $region35: #{tpu_custom_call.1} parent=11 // pred_region
          _
        $region36: #{tpu_custom_call.1} parent=11 // pred_fallthru
          _
      $region12: #{tpu_custom_call.1} parent=5 // pred_fallthru
        _
      %p255 = scmp.lt.s32.totalorder %s19, 2
      // Predicated region
      $region37: #{tpu_custom_call.1} parent=5 // pred_check
        %p256 = pneg %p255
      $region38: #{tpu_custom_call.1} parent=5 // pred_check_branch
        %258 = sbr.rel (%p256) target = $region40
      $region39: #{tpu_custom_call.1} parent=5 // pred_region
        // Predicated region
        $region41: #{tpu_custom_call.1} parent=39 // pred_check
          %p259 = pneg %p60
        $region42: #{tpu_custom_call.1} parent=39 // pred_check_branch
          %261 = sbr.rel (%p259) target = $region44
        $region43: #{tpu_custom_call.1} parent=39 // pred_region
          %s262 = sand.u32 %s19, 1
          %s263 = scalar_lea.sflag [#allocation9], %s262
          %s264 = sand.u32 %s50, 1
          %s265 = smul.addr %s264, 8
          %s266 = scalar_lea.vmem [#allocation8], %s265
          %s267 = smul.u32 2, %s19
          %s269 = ssub.s32 128, 128
          %270 = vsyncadd %s263, %s269
          %s271 = smul.addr %s267, 64
          %s272 = scalar_lea.hbm %s1, %s271
          %s273 = sshll.u32 %s266, 4
          %s274 = int_to_ptr.vmem [resolvable:$true] %s273
          %279 = dma.hbm_to_vmem [thread:$0]  %s272, 128, %s274, %s263, 64, 64, 4
        $region44: #{tpu_custom_call.1} parent=39 // pred_fallthru
          _
      $region40: #{tpu_custom_call.1} parent=5 // pred_fallthru
        _
      %p280 = scmp.le.s32.totalorder 1, %s19
      %p281 = scmp.lt.s32.totalorder %s19, 3
      %p282 = pnand %p280, %p281
      %p283 = pneg %p282
      // Predicated region
      $region45: #{tpu_custom_call.1} parent=5 // pred_check
        _
      $region46: #{tpu_custom_call.1} parent=5 // pred_check_branch
        %285 = sbr.rel (%p282) target = $region48
      $region47: #{tpu_custom_call.1} parent=5 // pred_region
        %s286 = ssub.s32 %s19, 1
        // Predicated region
        $region49: #{tpu_custom_call.1} parent=47 // pred_check
          %p287 = pneg %p40
        $region50: #{tpu_custom_call.1} parent=47 // pred_check_branch
          %289 = sbr.rel (%p287) target = $region52
        $region51: #{tpu_custom_call.1} parent=47 // pred_region
          %290 = dma.done [#allocation6], 1024
        $region52: #{tpu_custom_call.1} parent=47 // pred_fallthru
          _
        %s291 = sand.u32 %s24, 1
        %s292 = scalar_lea.sflag [#allocation9], %s291
        %s293 = sand.u32 %s53, 1
        %s294 = smul.addr %s293, 8
        %s295 = scalar_lea.vmem [#allocation8], %s294
        // Predicated region
        $region53: #{tpu_custom_call.1} parent=47 // pred_check
          %p296 = pneg %p66
        $region54: #{tpu_custom_call.1} parent=47 // pred_check_branch
          %298 = sbr.rel (%p296) target = $region56
        $region55: #{tpu_custom_call.1} parent=47 // pred_region
          %299 = dma.done %s292, 128
        $region56: #{tpu_custom_call.1} parent=47 // pred_fallthru
          _
        // Predicated region
        $region57: #{tpu_custom_call.1} parent=47 // pred_check
          %p300 = pneg %p108
        $region58: #{tpu_custom_call.1} parent=47 // pred_check_branch
          %302 = sbr.rel (%p300) target = $region60
        $region59: #{tpu_custom_call.1} parent=47 // pred_region
          %303 = dma.done [#allocation9], 2048
        $region60: #{tpu_custom_call.1} parent=47 // pred_fallthru
          _
        // Predicated region
        $region61: #{tpu_custom_call.1} parent=47 // pred_check
          %p304 = pneg %p150
        $region62: #{tpu_custom_call.1} parent=47 // pred_check_branch
          %306 = sbr.rel (%p304) target = $region64
        $region63: #{tpu_custom_call.1} parent=47 // pred_region
          %307 = dma.done [#allocation12], 2048
        $region64: #{tpu_custom_call.1} parent=47 // pred_fallthru
          _
        %p308 = pneg %p40
        %p309 = pneg %p37
        %s310 = sand.u32 %s24, 1
        %s311 = scalar_lea.sflag [#allocation9], %s310
        %s312 = sand.u32 %s53, 1
        %s313 = smul.addr %s312, 8
        %s314 = scalar_lea.vmem [#allocation8], %s313
        %p315 = pneg %p66
        %p316 = pneg %p63
        %p317 = pneg %p87
        %p318 = pneg %p84
        %p319 = pneg %p108
        %p320 = pneg %p105
        %p321 = pneg %p129
        %p322 = pneg %p126
        %p323 = pneg %p150
        %p324 = pneg %p147
        %p325 = pneg %p171
        %p326 = pneg %p168
        %p327 = pneg %p192
        %p328 = pneg %p189
        %s329 = smul.u32 2, %s24
        %s331 = smul.u32 %s24, 16
        %v332 = vld [vmem:[%s295] sm:$0xf]
        %v333 = vld [vmem:[%s295 + $0x4] sm:$0xf]
        %v334 = vld [vmem:[#allocation5] sm:$0xf]
        %v335 = vld [vmem:[#allocation5 + $0x4] sm:$0xf]
        %v336 = vld [vmem:[#allocation5 + $0x8] sm:$0xf]
        %v337 = vld [vmem:[#allocation5 + $0xc] sm:$0xf]
        %v338 = vld [vmem:[#allocation5 + $0x10] sm:$0xf]
        %v339 = vld [vmem:[#allocation5 + $0x14] sm:$0xf]
        %v340 = vld [vmem:[#allocation5 + $0x18] sm:$0xf]
        %v341 = vld [vmem:[#allocation5 + $0x1c] sm:$0xf]
        %v342 = vld [vmem:[#allocation5 + $0x20] sm:$0xf]
        %v343 = vld [vmem:[#allocation5 + $0x24] sm:$0xf]
        %v344 = vld [vmem:[#allocation5 + $0x28] sm:$0xf]
        %v345 = vld [vmem:[#allocation5 + $0x2c] sm:$0xf]
        %v346 = vld [vmem:[#allocation5 + $0x30] sm:$0xf]
        %v347 = vld [vmem:[#allocation5 + $0x34] sm:$0xf]
        %v348 = vld [vmem:[#allocation5 + $0x38] sm:$0xf]
        %v349 = vld [vmem:[#allocation5 + $0x3c] sm:$0xf]
        %v352 = vunpack.c.l.b16 %v332
        %v353 = vunpack.c.l.b16 %v333
        %v354 = vpack.c.b16 %v353, %v352
        %v372 = vunpack.c.l.b16 %v334
        %v373 = vunpack.c.l.b16 %v335
        %v374 = vunpack.c.l.b16 %v336
        %v375 = vunpack.c.l.b16 %v337
        %v376 = vunpack.c.l.b16 %v338
        %v377 = vunpack.c.l.b16 %v339
        %v378 = vunpack.c.l.b16 %v340
        %v379 = vunpack.c.l.b16 %v341
        %v380 = vunpack.c.l.b16 %v342
        %v381 = vunpack.c.l.b16 %v343
        %v382 = vunpack.c.l.b16 %v344
        %v383 = vunpack.c.l.b16 %v345
        %v384 = vunpack.c.l.b16 %v346
        %v385 = vunpack.c.l.b16 %v347
        %v386 = vunpack.c.l.b16 %v348
        %v387 = vunpack.c.l.b16 %v349
        %v388 = vpack.c.b16 %v373, %v372
        %v389 = vpack.c.b16 %v375, %v374
        %v390 = vpack.c.b16 %v377, %v376
        %v391 = vpack.c.b16 %v379, %v378
        %v392 = vpack.c.b16 %v381, %v380
        %v393 = vpack.c.b16 %v383, %v382
        %v394 = vpack.c.b16 %v385, %v384
        %v395 = vpack.c.b16 %v387, %v386
        %404 = vmatprep.subr.bf16.mxu0 0
        %405 = vmatpush1.bf16.msra.mxu0 %v388
        %406 = vmatprep.subr.bf16.mxu0 0
        %407 = vmatpush1.bf16.msra.mxu0 %v389
        %408 = vmatprep.subr.bf16.mxu0 0
        %409 = vmatpush1.bf16.msra.mxu0 %v390
        %410 = vmatprep.subr.bf16.mxu0 0
        %411 = vmatpush1.bf16.msra.mxu0 %v391
        %412 = vmatprep.subr.bf16.mxu0 0
        %413 = vmatpush1.bf16.msra.mxu0 %v392
        %414 = vmatprep.subr.bf16.mxu0 0
        %415 = vmatpush1.bf16.msra.mxu0 %v393
        %416 = vmatprep.subr.bf16.mxu0 0
        %417 = vmatpush1.bf16.msra.mxu0 %v394
        %418 = vmatprep.subr.bf16.mxu0 0
        %419 = vmatpush1.bf16.msra.mxu0 %v395
        %420 = vmatprep.subr.bf16.mxu0 0
        %421 = vmatpush1.bf16.msra.mxu0 0
        %422 = vmatprep.subr.bf16.mxu0 0
        %423 = vmatpush1.bf16.msra.mxu0 0
        %424 = vmatprep.subr.bf16.mxu0 0
        %425 = vmatpush1.bf16.msra.mxu0 0
        %426 = vmatprep.subr.bf16.mxu0 0
        %427 = vmatpush1.bf16.msra.mxu0 0
        %428 = vmatprep.subr.bf16.mxu0 0
        %429 = vmatpush1.bf16.msra.mxu0 0
        %430 = vmatprep.subr.bf16.mxu0 0
        %431 = vmatpush1.bf16.msra.mxu0 0
        %432 = vmatprep.subr.bf16.mxu0 0
        %433 = vmatpush1.bf16.msra.mxu0 0
        %434 = vmatprep.subr.bf16.mxu0 0
        %435 = vmatpush1.bf16.msra.mxu0 0
        %436 = vmatprep.mubr.bf16.mxu0 0
        %437 = vmatmul.mubr.bf16.gmra.mrb[0].mxu0 %v354
        %v438 = vpop.f32.mrb[0].mxu0
        %v439 = vadd.f32 0.0, %v438
        %v440 = vpop.f32.mrb[0].mxu0
        %v441 = vpop.f32.mrb[0].mxu0
        %v442 = vadd.f32 0.0, %v441
        %v443 = vpop.f32.mrb[0].mxu0
        %444 = vdwg.mxu0
        %s445 = sshra.s32 %s331, 3
        %s446 = sand.u32 %s331, 7
        %s447 = smul.addr %s445, 4
        %s448 = scalar_lea.vmem [#allocation5], %s447
        %v449 = vld [vmem:[%s448] sm:$0xf]
        %v450 = vld [vmem:[%s448 + $0x4] sm:$0xf]
        %v453 = vunpack.c.l.b16 %v449
        %v454 = vunpack.c.l.b16 %v450
        %v455 = vpack.c.b16 %v454, %v453
        %457 = vst [vmem:[#allocation3] sm:$0xff] %v455
        %v458 = vpack.c.bf16 %v442, %v439
        %459 = vst [vmem:[#allocation3 + $0x8] sm:$0xff] %v458
        %v460 = vld [vmem:[#allocation3] sm:$0xff]
        %v461 = vld [vmem:[#allocation3 + $0x8] sm:$0xff]
        %v462 = vld [vmem:[#allocation10] sm:$0xf]
        %v463 = vld [vmem:[#allocation10 + $0x4] sm:$0xf]
        %v464 = vld [vmem:[#allocation10 + $0x8] sm:$0xf]
        %v465 = vld [vmem:[#allocation10 + $0xc] sm:$0xf]
        %v466 = vld [vmem:[#allocation10 + $0x10] sm:$0xf]
        %v467 = vld [vmem:[#allocation10 + $0x14] sm:$0xf]
        %v468 = vld [vmem:[#allocation10 + $0x18] sm:$0xf]
        %v469 = vld [vmem:[#allocation10 + $0x1c] sm:$0xf]
        %v470 = vld [vmem:[#allocation10 + $0x20] sm:$0xf]
        %v471 = vld [vmem:[#allocation10 + $0x24] sm:$0xf]
        %v472 = vld [vmem:[#allocation10 + $0x28] sm:$0xf]
        %v473 = vld [vmem:[#allocation10 + $0x2c] sm:$0xf]
        %v474 = vld [vmem:[#allocation10 + $0x30] sm:$0xf]
        %v475 = vld [vmem:[#allocation10 + $0x34] sm:$0xf]
        %v476 = vld [vmem:[#allocation10 + $0x38] sm:$0xf]
        %v477 = vld [vmem:[#allocation10 + $0x3c] sm:$0xf]
        %v478 = vld [vmem:[#allocation10 + $0x40] sm:$0xf]
        %v479 = vld [vmem:[#allocation10 + $0x44] sm:$0xf]
        %v480 = vld [vmem:[#allocation10 + $0x48] sm:$0xf]
        %v481 = vld [vmem:[#allocation10 + $0x4c] sm:$0xf]
        %v482 = vld [vmem:[#allocation10 + $0x50] sm:$0xf]
        %v483 = vld [vmem:[#allocation10 + $0x54] sm:$0xf]
        %v484 = vld [vmem:[#allocation10 + $0x58] sm:$0xf]
        %v485 = vld [vmem:[#allocation10 + $0x5c] sm:$0xf]
        %v486 = vld [vmem:[#allocation10 + $0x60] sm:$0xf]
        %v487 = vld [vmem:[#allocation10 + $0x64] sm:$0xf]
        %v488 = vld [vmem:[#allocation10 + $0x68] sm:$0xf]
        %v489 = vld [vmem:[#allocation10 + $0x6c] sm:$0xf]
        %v490 = vld [vmem:[#allocation10 + $0x70] sm:$0xf]
        %v491 = vld [vmem:[#allocation10 + $0x74] sm:$0xf]
        %v492 = vld [vmem:[#allocation10 + $0x78] sm:$0xf]
        %v493 = vld [vmem:[#allocation10 + $0x7c] sm:$0xf]
        %v494 = vld [vmem:[%s4] sm:$0x1]
        %v496 = vlaneseq
        %v497 = vshrl.u32 %v496, 7
        %v498 = vsub.s32 0, %v497
        %v499 = vrot.slane %v494, %v498
        %v533 = vunpack.c.l.b16 %v462
        %v534 = vunpack.c.l.b16 %v463
        %v535 = vunpack.c.l.b16 %v464
        %v536 = vunpack.c.l.b16 %v465
        %v537 = vunpack.c.l.b16 %v466
        %v538 = vunpack.c.l.b16 %v467
        %v539 = vunpack.c.l.b16 %v468
        %v540 = vunpack.c.l.b16 %v469
        %v541 = vunpack.c.l.b16 %v470
        %v542 = vunpack.c.l.b16 %v471
        %v543 = vunpack.c.l.b16 %v472
        %v544 = vunpack.c.l.b16 %v473
        %v545 = vunpack.c.l.b16 %v474
        %v546 = vunpack.c.l.b16 %v475
        %v547 = vunpack.c.l.b16 %v476
        %v548 = vunpack.c.l.b16 %v477
        %v549 = vunpack.c.l.b16 %v478
        %v550 = vunpack.c.l.b16 %v479
        %v551 = vunpack.c.l.b16 %v480
        %v552 = vunpack.c.l.b16 %v481
        %v553 = vunpack.c.l.b16 %v482
        %v554 = vunpack.c.l.b16 %v483
        %v555 = vunpack.c.l.b16 %v484
        %v556 = vunpack.c.l.b16 %v485
        %v557 = vunpack.c.l.b16 %v486
        %v558 = vunpack.c.l.b16 %v487
        %v559 = vunpack.c.l.b16 %v488
        %v560 = vunpack.c.l.b16 %v489
        %v561 = vunpack.c.l.b16 %v490
        %v562 = vunpack.c.l.b16 %v491
        %v563 = vunpack.c.l.b16 %v492
        %v564 = vunpack.c.l.b16 %v493
        %v565 = vpack.c.b16 %v534, %v533
        %v566 = vpack.c.b16 %v536, %v535
        %v567 = vpack.c.b16 %v538, %v537
        %v568 = vpack.c.b16 %v540, %v539
        %v569 = vpack.c.b16 %v542, %v541
        %v570 = vpack.c.b16 %v544, %v543
        %v571 = vpack.c.b16 %v546, %v545
        %v572 = vpack.c.b16 %v548, %v547
        %v573 = vpack.c.b16 %v550, %v549
        %v574 = vpack.c.b16 %v552, %v551
        %v575 = vpack.c.b16 %v554, %v553
        %v576 = vpack.c.b16 %v556, %v555
        %v577 = vpack.c.b16 %v558, %v557
        %v578 = vpack.c.b16 %v560, %v559
        %v579 = vpack.c.b16 %v562, %v561
        %v580 = vpack.c.b16 %v564, %v563
        %597 = vmatprep.subr.bf16.mxu0 0
        %598 = vmatpush1.bf16.msra.mxu0 %v565
        %599 = vmatprep.subr.bf16.mxu0 0
        %600 = vmatpush1.bf16.msra.mxu0 %v566
        %601 = vmatprep.subr.bf16.mxu0 0
        %602 = vmatpush1.bf16.msra.mxu0 %v567
        %603 = vmatprep.subr.bf16.mxu0 0
        %604 = vmatpush1.bf16.msra.mxu0 %v568
        %605 = vmatprep.subr.bf16.mxu0 0
        %606 = vmatpush1.bf16.msra.mxu0 %v569
        %607 = vmatprep.subr.bf16.mxu0 0
        %608 = vmatpush1.bf16.msra.mxu0 %v570
        %609 = vmatprep.subr.bf16.mxu0 0
        %610 = vmatpush1.bf16.msra.mxu0 %v571
        %611 = vmatprep.subr.bf16.mxu0 0
        %612 = vmatpush1.bf16.msra.mxu0 %v572
        %613 = vmatprep.subr.bf16.mxu0 0
        %614 = vmatpush1.bf16.msra.mxu0 %v573
        %615 = vmatprep.subr.bf16.mxu0 0
        %616 = vmatpush1.bf16.msra.mxu0 %v574
        %617 = vmatprep.subr.bf16.mxu0 0
        %618 = vmatpush1.bf16.msra.mxu0 %v575
        %619 = vmatprep.subr.bf16.mxu0 0
        %620 = vmatpush1.bf16.msra.mxu0 %v576
        %621 = vmatprep.subr.bf16.mxu0 0
        %622 = vmatpush1.bf16.msra.mxu0 %v577
        %623 = vmatprep.subr.bf16.mxu0 0
        %624 = vmatpush1.bf16.msra.mxu0 %v578
        %625 = vmatprep.subr.bf16.mxu0 0
        %626 = vmatpush1.bf16.msra.mxu0 %v579
        %627 = vmatprep.subr.bf16.mxu0 0
        %628 = vmatpush1.bf16.msra.mxu0 %v580
        %629 = vmatprep.mubr.bf16.mxu0 %v461
        %630 = vmatmul.mubr.bf16.gmra.mrb[0].mxu0 %v460
        %v631 = vpop.f32.mrb[0].mxu0
        %v632 = vadd.f32 %v499, %v631
        %v633 = vpop.f32.mrb[0].mxu0
        %v634 = vpop.f32.mrb[0].mxu0
        %v635 = vadd.f32 %v499, %v634
        %v636 = vpop.f32.mrb[0].mxu0
        %637 = vdwg.mxu0
        %v638 = vmax.f32 %v632, 0.0
        %v639 = vmax.f32 %v635, 0.0
        %s640 = scalar_lea.vmem [#allocation2], %s331
        %641 = vst [vmem:[%s640] sm:$0xff] %v638
        %642 = vst [vmem:[%s640 + $0x8] sm:$0xff] %v639
        %p643 = scmp.eq.s32.totalorder %s24, 1
        // Predicated region
        $region65: #{tpu_custom_call.1} parent=47 // pred_check
          %p644 = pneg %p643
        $region66: #{tpu_custom_call.1} parent=47 // pred_check_branch
          %646 = sbr.rel (%p644) target = $region68
        $region67: #{tpu_custom_call.1} parent=47 // pred_region
          %v647 = vld [vmem:[#allocation2] sm:$0xff]
          %v648 = vld [vmem:[#allocation2 + $0x8] sm:$0xff]
          %v649 = vld [vmem:[#allocation2 + $0x10] sm:$0xff]
          %v650 = vld [vmem:[#allocation2 + $0x18] sm:$0xff]
          %v651 = vpack.c.bf16 %v648, %v647
          %v652 = vpack.c.bf16 %v650, %v649
          %v653 = vld [vmem:[%s2] sm:$0xf]
          %vm654 = vcmask 261120
          %v656 = vsel %vm654, %v653, 0
          %658 = vmatprep.subr.bf16.mxu0 0
          %659 = vmatpush1.bf16.msra.mxu0 %v651
          %660 = vmatprep.subr.bf16.mxu0 0
          %661 = vmatpush1.bf16.msra.mxu0 %v652
          %662 = vmatprep.subr.bf16.mxu0 0
          %663 = vmatpush1.bf16.msra.mxu0 0
          %664 = vmatprep.subr.bf16.mxu0 0
          %665 = vmatpush1.bf16.msra.mxu0 0
          %666 = vmatprep.subr.bf16.mxu0 0
          %667 = vmatpush1.bf16.msra.mxu0 0
          %668 = vmatprep.subr.bf16.mxu0 0
          %669 = vmatpush1.bf16.msra.mxu0 0
          %670 = vmatprep.subr.bf16.mxu0 0
          %671 = vmatpush1.bf16.msra.mxu0 0
          %672 = vmatprep.subr.bf16.mxu0 0
          %673 = vmatpush1.bf16.msra.mxu0 0
          %674 = vmatprep.subr.bf16.mxu0 0
          %675 = vmatpush1.bf16.msra.mxu0 0
          %676 = vmatprep.subr.bf16.mxu0 0
          %677 = vmatpush1.bf16.msra.mxu0 0
          %678 = vmatprep.subr.bf16.mxu0 0
          %679 = vmatpush1.bf16.msra.mxu0 0
          %680 = vmatprep.subr.bf16.mxu0 0
          %681 = vmatpush1.bf16.msra.mxu0 0
          %682 = vmatprep.subr.bf16.mxu0 0
          %683 = vmatpush1.bf16.msra.mxu0 0
          %684 = vmatprep.subr.bf16.mxu0 0
          %685 = vmatpush1.bf16.msra.mxu0 0
          %686 = vmatprep.subr.bf16.mxu0 0
          %687 = vmatpush1.bf16.msra.mxu0 0
          %688 = vmatprep.subr.bf16.mxu0 0
          %689 = vmatpush1.bf16.msra.mxu0 0
          %690 = vmatprep.mubr.bf16.mxu0 0
          %691 = vmatmul.mubr.bf16.gmra.mrb[0].mxu0 %v656
          %v692 = vpop.f32.mrb[0].mxu0
          %v693 = vadd.f32 0.0, %v692
          %v694 = vpop.f32.mrb[0].mxu0
          %v695 = vpop.f32.mrb[0].mxu0
          %v696 = vpop.f32.mrb[0].mxu0
          %697 = vdwg.mxu0
          %698 = vst [vmem:[#allocation4] sm:$0xf] %v651
          %v699 = vpack.c.bf16 %v693, %v693
          %700 = vst [vmem:[#allocation4 + $0x4] sm:$0xf] %v699
          %v701 = vld [vmem:[#allocation4] sm:$0xff]
          %v702 = vld [vmem:[#allocation11] sm:$0xf]
          %v703 = vld [vmem:[#allocation11 + $0x4] sm:$0xf]
          %v704 = vld [vmem:[#allocation11 + $0x8] sm:$0xf]
          %v705 = vld [vmem:[#allocation11 + $0xc] sm:$0xf]
          %v706 = vld [vmem:[#allocation11 + $0x10] sm:$0xf]
          %v707 = vld [vmem:[#allocation11 + $0x14] sm:$0xf]
          %v708 = vld [vmem:[#allocation11 + $0x18] sm:$0xf]
          %v709 = vld [vmem:[#allocation11 + $0x1c] sm:$0xf]
          %v710 = vld [vmem:[#allocation11 + $0x20] sm:$0xf]
          %v711 = vld [vmem:[#allocation11 + $0x24] sm:$0xf]
          %v712 = vld [vmem:[#allocation11 + $0x28] sm:$0xf]
          %v713 = vld [vmem:[#allocation11 + $0x2c] sm:$0xf]
          %v714 = vld [vmem:[#allocation11 + $0x30] sm:$0xf]
          %v715 = vld [vmem:[#allocation11 + $0x34] sm:$0xf]
          %v716 = vld [vmem:[#allocation11 + $0x38] sm:$0xf]
          %v717 = vld [vmem:[#allocation11 + $0x3c] sm:$0xf]
          %v718 = vld [vmem:[#allocation11 + $0x40] sm:$0xf]
          %v719 = vld [vmem:[#allocation11 + $0x44] sm:$0xf]
          %v720 = vld [vmem:[#allocation11 + $0x48] sm:$0xf]
          %v721 = vld [vmem:[#allocation11 + $0x4c] sm:$0xf]
          %v722 = vld [vmem:[#allocation11 + $0x50] sm:$0xf]
          %v723 = vld [vmem:[#allocation11 + $0x54] sm:$0xf]
          %v724 = vld [vmem:[#allocation11 + $0x58] sm:$0xf]
          %v725 = vld [vmem:[#allocation11 + $0x5c] sm:$0xf]
          %v726 = vld [vmem:[#allocation11 + $0x60] sm:$0xf]
          %v727 = vld [vmem:[#allocation11 + $0x64] sm:$0xf]
          %v728 = vld [vmem:[#allocation11 + $0x68] sm:$0xf]
          %v729 = vld [vmem:[#allocation11 + $0x6c] sm:$0xf]
          %v730 = vld [vmem:[#allocation11 + $0x70] sm:$0xf]
          %v731 = vld [vmem:[#allocation11 + $0x74] sm:$0xf]
          %v732 = vld [vmem:[#allocation11 + $0x78] sm:$0xf]
          %v733 = vld [vmem:[#allocation11 + $0x7c] sm:$0xf]
          %v734 = vld [vmem:[%s6] sm:$0x1]
          %v736 = vlaneseq
          %v737 = vshrl.u32 %v736, 7
          %v738 = vsub.s32 0, %v737
          %v739 = vrot.slane %v734, %v738
          %v742 = vunpack.c.l.b16 %v701
          %v743 = vunpack.c.h.b16 %v701
          %v744 = vpack.c.b16 %v742, %v742
          %v745 = vpack.c.b16 %v743, %v743
          %v780 = vunpack.c.l.b16 %v702
          %v781 = vunpack.c.l.b16 %v703
          %v782 = vunpack.c.l.b16 %v704
          %v783 = vunpack.c.l.b16 %v705
          %v784 = vunpack.c.l.b16 %v706
          %v785 = vunpack.c.l.b16 %v707
          %v786 = vunpack.c.l.b16 %v708
          %v787 = vunpack.c.l.b16 %v709
          %v788 = vunpack.c.l.b16 %v710
          %v789 = vunpack.c.l.b16 %v711
          %v790 = vunpack.c.l.b16 %v712
          %v791 = vunpack.c.l.b16 %v713
          %v792 = vunpack.c.l.b16 %v714
          %v793 = vunpack.c.l.b16 %v715
          %v794 = vunpack.c.l.b16 %v716
          %v795 = vunpack.c.l.b16 %v717
          %v796 = vunpack.c.l.b16 %v718
          %v797 = vunpack.c.l.b16 %v719
          %v798 = vunpack.c.l.b16 %v720
          %v799 = vunpack.c.l.b16 %v721
          %v800 = vunpack.c.l.b16 %v722
          %v801 = vunpack.c.l.b16 %v723
          %v802 = vunpack.c.l.b16 %v724
          %v803 = vunpack.c.l.b16 %v725
          %v804 = vunpack.c.l.b16 %v726
          %v805 = vunpack.c.l.b16 %v727
          %v806 = vunpack.c.l.b16 %v728
          %v807 = vunpack.c.l.b16 %v729
          %v808 = vunpack.c.l.b16 %v730
          %v809 = vunpack.c.l.b16 %v731
          %v810 = vunpack.c.l.b16 %v732
          %v811 = vunpack.c.l.b16 %v733
          %v812 = vpack.c.b16 %v781, %v780
          %v813 = vpack.c.b16 %v783, %v782
          %v814 = vpack.c.b16 %v785, %v784
          %v815 = vpack.c.b16 %v787, %v786
          %v816 = vpack.c.b16 %v789, %v788
          %v817 = vpack.c.b16 %v791, %v790
          %v818 = vpack.c.b16 %v793, %v792
          %v819 = vpack.c.b16 %v795, %v794
          %v820 = vpack.c.b16 %v797, %v796
          %v821 = vpack.c.b16 %v799, %v798
          %v822 = vpack.c.b16 %v801, %v800
          %v823 = vpack.c.b16 %v803, %v802
          %v824 = vpack.c.b16 %v805, %v804
          %v825 = vpack.c.b16 %v807, %v806
          %v826 = vpack.c.b16 %v809, %v808
          %v827 = vpack.c.b16 %v811, %v810
          %844 = vmatprep.subr.bf16.mxu0 0
          %845 = vmatpush1.bf16.msra.mxu0 %v812
          %846 = vmatprep.subr.bf16.mxu0 0
          %847 = vmatpush1.bf16.msra.mxu0 %v813
          %848 = vmatprep.subr.bf16.mxu0 0
          %849 = vmatpush1.bf16.msra.mxu0 %v814
          %850 = vmatprep.subr.bf16.mxu0 0
          %851 = vmatpush1.bf16.msra.mxu0 %v815
          %852 = vmatprep.subr.bf16.mxu0 0
          %853 = vmatpush1.bf16.msra.mxu0 %v816
          %854 = vmatprep.subr.bf16.mxu0 0
          %855 = vmatpush1.bf16.msra.mxu0 %v817
          %856 = vmatprep.subr.bf16.mxu0 0
          %857 = vmatpush1.bf16.msra.mxu0 %v818
          %858 = vmatprep.subr.bf16.mxu0 0
          %859 = vmatpush1.bf16.msra.mxu0 %v819
          %860 = vmatprep.subr.bf16.mxu0 0
          %861 = vmatpush1.bf16.msra.mxu0 %v820
          %862 = vmatprep.subr.bf16.mxu0 0
          %863 = vmatpush1.bf16.msra.mxu0 %v821
          %864 = vmatprep.subr.bf16.mxu0 0
          %865 = vmatpush1.bf16.msra.mxu0 %v822
          %866 = vmatprep.subr.bf16.mxu0 0
          %867 = vmatpush1.bf16.msra.mxu0 %v823
          %868 = vmatprep.subr.bf16.mxu0 0
          %869 = vmatpush1.bf16.msra.mxu0 %v824
          %870 = vmatprep.subr.bf16.mxu0 0
          %871 = vmatpush1.bf16.msra.mxu0 %v825
          %872 = vmatprep.subr.bf16.mxu0 0
          %873 = vmatpush1.bf16.msra.mxu0 %v826
          %874 = vmatprep.subr.bf16.mxu0 0
          %875 = vmatpush1.bf16.msra.mxu0 %v827
          %876 = vmatprep.mubr.bf16.mxu0 %v745
          %877 = vmatmul.mubr.bf16.gmra.mrb[0].mxu0 %v744
          %v878 = vpop.f32.mrb[0].mxu0
          %v879 = vadd.f32 %v739, %v878
          %v880 = vpop.f32.mrb[0].mxu0
          %v881 = vpop.f32.mrb[0].mxu0
          %v882 = vpop.f32.mrb[0].mxu0
          %883 = vdwg.mxu0
          %v884 = vlaneseq
          %v885 = vand.u32 %v884, 127
          %vm886 = vcmp.lt.s32.totalorder %v885, 4
          %v887 = vsel %vm886, %v879, -1e+30
          %888 = vmax.xlane.f32.xlu0 %v887
          %v889 = vpop.xlane.xlu0 %888
          %v890 = vsub.f32 %v887, %v889
          %v891 = vmul.f32 %v890, 1.442695
          %v892 = vpow.pop %v891
          %893 = vadd.xlane.f32.xlu0 %v892
          %v894 = vpop.xlane.xlu0 %893
          %v895 = vlog2.pop %v894
          %v896 = vmul.f32 %v895, 0.6931472
          %v897 = vsub.f32 %v890, %v896
          %898 = vst [vmem:[#allocation13] sm:$0xff] %v897
        $region68: #{tpu_custom_call.1} parent=47 // pred_fallthru
          _
        // Predicated region
        $region69: #{tpu_custom_call.1} parent=47 // pred_check
          %p899 = pneg %p189
        $region70: #{tpu_custom_call.1} parent=47 // pred_check_branch
          %901 = sbr.rel (%p899) target = $region72
        $region71: #{tpu_custom_call.1} parent=47 // pred_region
          %s903 = ssub.s32 128, 128
          %904 = vsyncadd [#allocation7], %s903
          %s906 = sshll.u32 [#allocation13], 4
          %s907 = int_to_ptr.vmem [resolvable:$true] %s906
          %909 = dma.vmem_to_hbm [thread:$0]  %s907, 128, %s7, [#allocation7]
        $region72: #{tpu_custom_call.1} parent=47 // pred_fallthru
          _
        // Predicated region
        $region73: #{tpu_custom_call.1} parent=47 // pred_check
          %p910 = pneg %p189
        $region74: #{tpu_custom_call.1} parent=47 // pred_check_branch
          %912 = sbr.rel (%p910) target = $region76
        $region75: #{tpu_custom_call.1} parent=47 // pred_region
          %913 = dma.done [#allocation7], 128
        $region76: #{tpu_custom_call.1} parent=47 // pred_fallthru
          _
      $region48: #{tpu_custom_call.1} parent=5 // pred_fallthru
        _
      %p914 = scmp.le.s32.totalorder 2, %s19
      // Predicated region
      $region77: #{tpu_custom_call.1} parent=5 // pred_check
        %p915 = pneg %p914
      $region78: #{tpu_custom_call.1} parent=5 // pred_check_branch
        %917 = sbr.rel (%p915) target = $region80
      $region79: #{tpu_custom_call.1} parent=5 // pred_region
        %s918 = ssub.s32 %s19, 2
      $region80: #{tpu_custom_call.1} parent=5 // pred_fallthru
        _
    $region6: #{tpu_custom_call.1} parent=1 // loop_footer
      %s23 = sadd.s32 1, %s19
    $region7: #{tpu_custom_call.1} parent=1 // loop_footer_branch
      %18 = sbr.rel target = $region3
    $region8: #{tpu_custom_call.1} parent=1 // loop_exit
      _
    %919 = vsyncpa [#allocation6], 1
    %s920 = scalar_lea.sflag [#allocation6], 1
    %921 = vsyncpa %s920, 1
    %922 = vsyncpa [#allocation9], 1
    %s923 = scalar_lea.sflag [#allocation9], 1
    %924 = vsyncpa %s923, 1
    %925 = vsyncpa [#allocation12], 1
    %926 = vsyncpa [#allocation7], 1
    %s927 = scalar_lea.sflag [#allocation7], 1
    %928 = vsyncpa %s927, 1

</llo_original>
